<compile_context>
chip_gen: v5e
topology: v5e:2x2
jax: 0.10.0
libtpu: 0.0.40
codegen_flags: <defaults>
</compile_context>

<pallas_src>
import math

import jax
import jax.numpy as jnp
from jax import lax
from jax.experimental import pallas as pl
from jax.experimental.pallas import tpu as pltpu

# ------------------------- module constants -------------------------
EMBED_DIM = 128      # embedding_dim (output channels)
IN_CH = 3            # Conv2d in_channels
PATCH = 4            # patch_size == kernel_size == stride
BN_EPS = 1e-5


# ------------------------- Pallas kernel -------------------------
def _conv_int_kernel(p_ref, w_ref, b_ref, g_ref, beta_ref, o_ref):
    """Fused patch-embedding conv (as matmul) + bias + training-mode BatchNorm.

    p_ref:    (P, K)  im2col patches               (P = B*H'*W', K = C*kh*kw)
    w_ref:    (K, O)  reshaped conv weight
    b_ref:    (1, O)  conv bias
    g_ref:    (1, O)  BN gamma
    beta_ref: (1, O)  BN beta
    o_ref:    (P, O)  normalized output (lane-dense, O = 128)
    """
    patches = p_ref[...].astype(jnp.float32)
    w = w_ref[...].astype(jnp.float32)

    # Conv2d(stride == kernel) == one small matmul on the MXU (default precision per review).
    y = jnp.dot(patches, w, preferred_element_type=jnp.float32)
    y = y + b_ref[...].astype(jnp.float32)

    # SyncBatchNorm, training mode on a single device: per-channel batch statistics over
    # every (batch, spatial) position, biased variance (matches F.batch_norm training).
    mu = jnp.mean(y, axis=0, keepdims=True)
    var = jnp.mean(jnp.square(y - mu), axis=0, keepdims=True)
    yn = (y - mu) * lax.rsqrt(var + BN_EPS)

    o_ref[...] = (yn * g_ref[...] + beta_ref[...]).astype(o_ref.dtype)


# ------------------------- wrapper -------------------------
def conv_int_forward(x, params):
    """x: (B, 3, H, W) NCHW  ->  (B, EMBED_DIM, H//PATCH, W//PATCH) NCHW."""
    B, C, H, W = x.shape
    Ho, Wo = H // PATCH, W // PATCH
    P = B * Ho * Wo
    K = C * PATCH * PATCH
    O = params['w'].shape[0]

    # im2col: one tiny fused XLA reshape/transpose feeding the single pallas_call.
    # patches[b*Ho*Wo + ho*Wo + wo, c*PATCH*PATCH + di*PATCH + dj] = x[b, c, ho*P+di, wo*P+dj]
    patches = (x.reshape(B, C, Ho, PATCH, Wo, PATCH)
                 .transpose(0, 2, 4, 1, 3, 5)
                 .reshape(P, K))
    wmat = params['w'].reshape(O, K).T                       # (K, O), matches im2col column order

    out_flat = pl.pallas_call(
        _conv_int_kernel,
        out_shape=jax.ShapeDtypeStruct((P, O), x.dtype),
        # Gridless call: every operand is a full-array VMEM block (total < 32 KB),
        # so there is no pipelining / per-step overhead and the output tile is lane-dense.
    )(patches, wmat,
      params['b'].reshape(1, O),
      params['gamma'].reshape(1, O),
      params['beta'].reshape(1, O))

    # Back to PyTorch's NCHW output layout (single tiny XLA transpose on ~16 KB).
    return out_flat.reshape(B, Ho, Wo, O).transpose(0, 3, 1, 2)


# ------------------------- pure-JAX reference -------------------------
def reference_forward(x, params):
    y = lax.conv_general_dilated(
        x, params['w'],
        window_strides=(PATCH, PATCH), padding='VALID',
        dimension_numbers=('NCHW', 'OIHW', 'NCHW'))
    y = y + params['b'][None, :, None, None]
    mu = y.mean(axis=(0, 2, 3), keepdims=True)
    var = ((y - mu) ** 2).mean(axis=(0, 2, 3), keepdims=True)
    yn = (y - mu) / jnp.sqrt(var + BN_EPS)
    return yn * params['gamma'][None, :, None, None] + params['beta'][None, :, None, None]


# ------------------------- main -------------------------
if __name__ == "__main__":
    key = jax.random.PRNGKey(0)
    ks = jax.random.split(key, 5)

    B, H, W = 2, 16, 16                                       # small NCHW input (B, 3, 16, 16)
    x = jax.random.normal(ks[0], (B, IN_CH, H, W), jnp.float32)

    fan_in = IN_CH * PATCH * PATCH
    params = {
        # Conv2d weight (O, C, kh, kw) and bias
        'w': jax.random.normal(ks[1], (EMBED_DIM, IN_CH, PATCH, PATCH), jnp.float32)
             / math.sqrt(fan_in),
        'b': 0.1 * jax.random.normal(ks[2], (EMBED_DIM,), jnp.float32),
        # SyncBatchNorm affine params
        'gamma': 1.0 + 0.1 * jax.random.normal(ks[3], (EMBED_DIM,), jnp.float32),
        'beta': 0.1 * jax.random.normal(ks[4], (EMBED_DIM,), jnp.float32),
    }

    fwd = jax.jit(conv_int_forward)
    out = jax.block_until_ready(fwd(x, params))
    ref = jax.block_until_ready(reference_forward(x, params))

    assert out.shape == (B, EMBED_DIM, H // PATCH, W // PATCH), out.shape
    assert bool(jnp.all(jnp.isfinite(out)))
    max_err = float(jnp.max(jnp.abs(out - ref)))
    # Default (bf16-pass) MXU precision with K=48 keeps the error far below this bound.
    assert max_err < 2e-2, f"mismatch vs reference: {max_err}"
    print("KERNEL_OK")
</pallas_src>

<mosaic_0001>
module attributes {stable_mosaic.version = 11 : i64} {
  func.func @_conv_int_kernel(%arg0: memref<32x48xf32, #tpu.memory_space<vmem>>, %arg1: memref<48x128xf32, #tpu.memory_space<vmem>>, %arg2: memref<1x128xf32, #tpu.memory_space<vmem>>, %arg3: memref<1x128xf32, #tpu.memory_space<vmem>>, %arg4: memref<1x128xf32, #tpu.memory_space<vmem>>, %arg5: memref<32x128xf32, #tpu.memory_space<vmem>>) attributes {dimension_semantics = [], scalar_prefetch = 0 : i64, scratch_operands = 0 : i64, tpu.core_type = #tpu.core_type<tc>} {
    %c0 = arith.constant 0 : index
    %c0_0 = arith.constant 0 : index
    %0 = vector.load %arg0[%c0, %c0_0] : memref<32x48xf32, #tpu.memory_space<vmem>>, vector<32x48xf32>
    %c0_1 = arith.constant 0 : index
    %c0_2 = arith.constant 0 : index
    %1 = vector.load %arg1[%c0_1, %c0_2] : memref<48x128xf32, #tpu.memory_space<vmem>>, vector<48x128xf32>
    %cst = arith.constant dense<0.000000e+00> : vector<32x128xf32>
    %2 = tpu.matmul %0, %1, %cst {dimension_numbers = #tpu.dot_dimension_numbers<[1], [0], [0], [1], [0, 0, 1, 1], [], []>} : vector<32x48xf32>, vector<48x128xf32>, vector<32x128xf32> -> vector<32x128xf32>
    %c0_3 = arith.constant 0 : index
    %c0_4 = arith.constant 0 : index
    %3 = vector.load %arg2[%c0_3, %c0_4] : memref<1x128xf32, #tpu.memory_space<vmem>>, vector<1x128xf32>
    %4 = vector.broadcast %3 : vector<1x128xf32> to vector<32x128xf32>
    %5 = arith.addf %2, %4 : vector<32x128xf32>
    %cst_5 = arith.constant dense<0.000000e+00> : vector<128xf32>
    %6 = vector.multi_reduction <add>, %5, %cst_5 [0] : vector<32x128xf32> to vector<128xf32>
    %7 = vector.shape_cast %6 : vector<128xf32> to vector<1x128xf32>
    %cst_6 = arith.constant 3.200000e+01 : f32
    %8 = vector.broadcast %cst_6 : f32 to vector<1x128xf32>
    %9 = arith.divf %7, %8 : vector<1x128xf32>
    %10 = vector.broadcast %9 : vector<1x128xf32> to vector<32x128xf32>
    %11 = arith.subf %5, %10 : vector<32x128xf32>
    %12 = arith.mulf %11, %11 : vector<32x128xf32>
    %cst_7 = arith.constant dense<0.000000e+00> : vector<128xf32>
    %13 = vector.multi_reduction <add>, %12, %cst_7 [0] : vector<32x128xf32> to vector<128xf32>
    %14 = vector.shape_cast %13 : vector<128xf32> to vector<1x128xf32>
    %cst_8 = arith.constant 3.200000e+01 : f32
    %15 = vector.broadcast %cst_8 : f32 to vector<1x128xf32>
    %16 = arith.divf %14, %15 : vector<1x128xf32>
    %17 = vector.broadcast %9 : vector<1x128xf32> to vector<32x128xf32>
    %18 = arith.subf %5, %17 : vector<32x128xf32>
    %cst_9 = arith.constant 9.99999974E-6 : f32
    %19 = vector.broadcast %cst_9 : f32 to vector<1x128xf32>
    %20 = arith.addf %16, %19 : vector<1x128xf32>
    %21 = math.rsqrt %20 : vector<1x128xf32>
    %22 = vector.broadcast %21 : vector<1x128xf32> to vector<32x128xf32>
    %23 = arith.mulf %18, %22 : vector<32x128xf32>
    %c0_10 = arith.constant 0 : index
    %c0_11 = arith.constant 0 : index
    %24 = vector.load %arg3[%c0_10, %c0_11] : memref<1x128xf32, #tpu.memory_space<vmem>>, vector<1x128xf32>
    %25 = vector.broadcast %24 : vector<1x128xf32> to vector<32x128xf32>
    %26 = arith.mulf %23, %25 : vector<32x128xf32>
    %c0_12 = arith.constant 0 : index
    %c0_13 = arith.constant 0 : index
    %27 = vector.load %arg4[%c0_12, %c0_13] : memref<1x128xf32, #tpu.memory_space<vmem>>, vector<1x128xf32>
    %28 = vector.broadcast %27 : vector<1x128xf32> to vector<32x128xf32>
    %29 = arith.addf %26, %28 : vector<32x128xf32>
    %c0_14 = arith.constant 0 : index
    %c0_15 = arith.constant 0 : index
    %30 = vector.load %arg5[%c0_14, %c0_15] : memref<32x128xf32, #tpu.memory_space<vmem>>, vector<32x128xf32>
    tpu.vector_store %arg5[%c0_14, %c0_15], %29 {strides = array<i32>} : memref<32x128xf32, #tpu.memory_space<vmem>>, vector<32x128xf32>,
    return
  }
}

</mosaic_0001>

<llo_original>
// kernel: conv_int_forward.1
$region0: #{conv_int_forward.1}
  #allocation0 [shape = 'u32[]', space=smem, size = 0x4, offset = 0x4, fixed_abs, tag = 'smem constant byte address 0x4 - core index']
  #allocation1 [shape = 'u32[72,128]{1,0:T(1,128)}', space=vmem, size = 0x9000, scoped, tag = 'internal scratch']
  %s0 = inlined_call_operand.vmem [shape: f32[32,48], index: 0, kind: input, shape index: {}]
  %s1 = inlined_call_operand.vmem [shape: f32[48,128], index: 1, kind: input, shape index: {}]
  %s2 = inlined_call_operand.vmem [shape: f32[1,128], index: 2, kind: input, shape index: {}]
  %s3 = inlined_call_operand.vmem [shape: f32[1,128], index: 3, kind: input, shape index: {}]
  %s4 = inlined_call_operand.vmem [shape: f32[1,128], index: 4, kind: input, shape index: {}]
  %s5 = inlined_call_operand.hbm [shape: f32[32,128], index: 5, kind: output, shape index: {}]
  %s6 = sld [smem:[#allocation0]]
  $region30: #{conv_int_forward.1} parent=0
    _
  %s8 = ssub.s32 1, %s6
  %s9 = scalar_select 0, %s8, %s6
  $region1: #{conv_int_forward.1} parent=0
    #allocation2 [shape = 'u8[16384]{0}', space=vmem, size = 0x4000, scoped, tag = 'output window, operand 0, single buffered']
    #allocation3 [shape = 's32[1]{0}', space=sflag, size = 0x4, scoped, tag = 'scoped memory for conv_int_forward.1']
    %10 = vsyncpa [#allocation3], 0
    // Predicated region
    $region2: #{conv_int_forward.1} parent=1 // pred_check
      _
    $region3: #{conv_int_forward.1} parent=1 // pred_check_branch
      %12 = sbr.rel (0) target = $region5
    $region4: #{conv_int_forward.1} parent=1 // pred_region
      _
    $region5: #{conv_int_forward.1} parent=1 // pred_fallthru
      _
    // Predicated region
    $region6: #{conv_int_forward.1} parent=1 // pred_check
      _
    $region7: #{conv_int_forward.1} parent=1 // pred_check_branch
      %14 = sbr.rel (0) target = $region9
    $region8: #{conv_int_forward.1} parent=1 // pred_region
      _
    $region9: #{conv_int_forward.1} parent=1 // pred_fallthru
      _
    // Predicated region
    $region10: #{conv_int_forward.1} parent=1 // pred_check
      _
    $region11: #{conv_int_forward.1} parent=1 // pred_check_branch
      %16 = sbr.rel (0) target = $region13
    $region12: #{conv_int_forward.1} parent=1 // pred_region
      _
    $region13: #{conv_int_forward.1} parent=1 // pred_fallthru
      _
    // Predicated region
    $region14: #{conv_int_forward.1} parent=1 // pred_check
      _
    $region15: #{conv_int_forward.1} parent=1 // pred_check_branch
      %18 = sbr.rel (0) target = $region17
    $region16: #{conv_int_forward.1} parent=1 // pred_region
      _
    $region17: #{conv_int_forward.1} parent=1 // pred_fallthru
      _
    // Predicated region
    $region18: #{conv_int_forward.1} parent=1 // pred_check
      _
    $region19: #{conv_int_forward.1} parent=1 // pred_check_branch
      %20 = sbr.rel (0) target = $region21
    $region20: #{conv_int_forward.1} parent=1 // pred_region
      _
    $region21: #{conv_int_forward.1} parent=1 // pred_fallthru
      _
    %v21 = vld [vmem:[%s0] sm:$0xff]
    %v22 = vld [vmem:[%s0 + $0x8] sm:$0xff]
    %v23 = vld [vmem:[%s0 + $0x10] sm:$0xff]
    %v24 = vld [vmem:[%s0 + $0x18] sm:$0xff]
    %v25 = vld [vmem:[%s1] sm:$0xff]
    %v26 = vld [vmem:[%s1 + $0x8] sm:$0xff]
    %v27 = vld [vmem:[%s1 + $0x10] sm:$0xff]
    %v28 = vld [vmem:[%s1 + $0x18] sm:$0xff]
    %v29 = vld [vmem:[%s1 + $0x20] sm:$0xff]
    %v30 = vld [vmem:[%s1 + $0x28] sm:$0xff]
    %v31 = vld [vmem:[%s2] sm:$0x1]
    %v33 = vperm.slane %v31, 0
    %vm35 = vcmask 392192
    %v37 = vsel %vm35, %v21, 0
    %v40 = vsel %vm35, %v22, 0
    %v43 = vsel %vm35, %v23, 0
    %v46 = vsel %vm35, %v24, 0
    %48 = vmatpush.msra.mxu0 0.0
    %49 = vmatpush.msra.mxu0 0.0
    %50 = vmatpush.msra.mxu0 0.0
    %51 = vmatpush.msra.mxu0 0.0
    %52 = vmatpush.msra.mxu0 0.0
    %53 = vmatpush.msra.mxu0 0.0
    %54 = vmatpush.msra.mxu0 0.0
    %55 = vmatpush.msra.mxu0 0.0
    %56 = vmatpush.msra.mxu0 0.0
    %57 = vmatpush.msra.mxu0 0.0
    %58 = vmatpush.msra.mxu0 %v30
    %59 = vmatpush.msra.mxu0 %v29
    %60 = vmatpush.msra.mxu0 %v28
    %61 = vmatpush.msra.mxu0 %v27
    %62 = vmatpush.msra.mxu0 %v26
    %63 = vmatpush.msra.mxu0 %v25
    %64 = vmatmul.f32.gmra.mxu0 %v37
    %v65 = vpop.f32.mrf.mxu0
    %v66 = vadd.f32 %v33, %v65
    %67 = vmatmul.f32.gmra.mxu0 %v40
    %v68 = vpop.f32.mrf.mxu0
    %v69 = vadd.f32 %v33, %v68
    %70 = vmatmul.f32.gmra.mxu0 %v43
    %v71 = vpop.f32.mrf.mxu0
    %v72 = vadd.f32 %v33, %v71
    %73 = vmatmul.f32.gmra.mxu0 %v46
    %v74 = vpop.f32.mrf.mxu0
    %v75 = vadd.f32 %v33, %v74
    %76 = vdwg.mxu0
    %v77 = vadd.f32 %v66, %v69
    %v78 = vadd.f32 %v77, %v72
    %v79 = vadd.f32 %v78, %v75
    %v80 = vrot.slane %v79, 4
    %v81 = vadd.f32 %v79, %v80
    %v82 = vrot.slane %v81, 2
    %v83 = vadd.f32 %v81, %v82
    %v84 = vrot.slane %v83, 1
    %v85 = vadd.f32 %v83, %v84
    %v86 = vrcp.pop 32.0
    %v87 = vmul.f32 32.0, %v86
    %v88 = vsub.f32 1.0, %v87
    %v89 = vmul.f32 %v86, %v88
    %v90 = vadd.f32 %v86, %v89
    %vm91 = vweird.f32 %v86
    %v92 = vsel %vm91, %v86, %v90
    %v93 = vmul.f32 %v85, %v92
    %v94 = vsub.f32 %v66, %v93
    %v95 = vsub.f32 %v69, %v93
    %v96 = vsub.f32 %v72, %v93
    %v97 = vsub.f32 %v75, %v93
    %v98 = vmul.f32 %v94, %v94
    %v99 = vmul.f32 %v95, %v95
    %v100 = vmul.f32 %v96, %v96
    %v101 = vmul.f32 %v97, %v97
    %v102 = vadd.f32 %v98, %v99
    %v103 = vadd.f32 %v102, %v100
    %v104 = vadd.f32 %v103, %v101
    %v105 = vrot.slane %v104, 4
    %v106 = vadd.f32 %v104, %v105
    %v107 = vrot.slane %v106, 2
    %v108 = vadd.f32 %v106, %v107
    %v109 = vrot.slane %v108, 1
    %v110 = vadd.f32 %v108, %v109
    %v111 = vmul.f32 %v110, %v92
    %v112 = vadd.f32 %v111, 1e-05
    %v113 = vrsqrt.pop %v112
    %v114 = vmul.f32 %v113, %v112
    %v115 = vmul.f32 %v114, %v113
    %v116 = vmul.f32 0.5, %v115
    %v117 = vsub.f32 1.5, %v116
    %v118 = vmul.f32 %v113, %v117
    %vm119 = vweird.f32 %v112
    %vm120 = vweird.f32 %v113
    %vm121 = vmor %vm119, %vm120
    %v122 = vsel %vm121, %v113, %v118
    %v123 = vmul.f32 %v94, %v122
    %v124 = vmul.f32 %v95, %v122
    %v125 = vmul.f32 %v96, %v122
    %v126 = vmul.f32 %v97, %v122
    %v127 = vld [vmem:[%s3] sm:$0x1]
    %v129 = vperm.slane %v127, 0
    %v131 = vmul.f32 %v123, %v129
    %v132 = vmul.f32 %v124, %v129
    %v133 = vmul.f32 %v125, %v129
    %v134 = vmul.f32 %v126, %v129
    %v135 = vld [vmem:[%s4] sm:$0x1]
    %v137 = vperm.slane %v135, 0
    %v139 = vadd.f32 %v131, %v137
    %v140 = vadd.f32 %v132, %v137
    %v141 = vadd.f32 %v133, %v137
    %v142 = vadd.f32 %v134, %v137
    %143 = vst [vmem:[#allocation2] sm:$0xff] %v139
    %144 = vst [vmem:[#allocation2 + $0x8] sm:$0xff] %v140
    %145 = vst [vmem:[#allocation2 + $0x10] sm:$0xff] %v141
    %146 = vst [vmem:[#allocation2 + $0x18] sm:$0xff] %v142
    // Predicated region
    $region22: #{conv_int_forward.1} parent=1 // pred_check
      _
    $region23: #{conv_int_forward.1} parent=1 // pred_check_branch
      %148 = sbr.rel (0) target = $region25
    $region24: #{conv_int_forward.1} parent=1 // pred_region
      %150 = vsyncadd [#allocation3], 0
      %s151 = sshll.u32 [#allocation2], 4
      %s152 = int_to_ptr.vmem [resolvable:$true] %s151
      %s153 = sshll.u32 %s5, 4
      %s154 = int_to_ptr.hbm [resolvable:$true] %s153
      %159 = dma.vmem_to_hbm [thread:$0]  %s152, 512, %s154, [#allocation3], 128, 128, 8
    $region25: #{conv_int_forward.1} parent=1 // pred_fallthru
      _
    // Predicated region
    $region26: #{conv_int_forward.1} parent=1 // pred_check
      _
    $region27: #{conv_int_forward.1} parent=1 // pred_check_branch
      %161 = sbr.rel (0) target = $region29
    $region28: #{conv_int_forward.1} parent=1 // pred_region
      %163 = dma.done [#allocation3], 512
    $region29: #{conv_int_forward.1} parent=1 // pred_fallthru
      _
    %164 = vsyncpa [#allocation3], 1

</llo_original>
